<compile_context>
chip_gen: v6e
topology: v6e:2x2x1
jax: 0.10.0
libtpu: 0.0.40
codegen_flags: <defaults>
</compile_context>

<pallas_src>
import functools

import jax
import jax.numpy as jnp
from jax.experimental import pallas as pl
from jax.experimental.pallas import tpu as pltpu


def _pointnet_kernel(n_layers, *refs):
    """refs = (x_ref, w_0..w_{L-1}, b_0..b_{L-1}, o_ref, acc_ref).

    x_ref:  (b_tile, n_tile, d0)  bf16 point chunk for `b_tile` batch rows.
    w_i:    (d_i, d_{i+1})        bf16 (already (in, out), i.e. torch W.T)
    b_i:    (1, d_{i+1})          f32
    o_ref:  (b_tile, d_last)      output block (written on last point chunk)
    acc_ref:(b_tile, d_last) f32  running max over point chunks
    """
    x_ref = refs[0]
    w_refs = refs[1:1 + n_layers]
    b_refs = refs[1 + n_layers:1 + 2 * n_layers]
    o_ref = refs[1 + 2 * n_layers]
    acc_ref = refs[2 + 2 * n_layers]

    n_idx = pl.program_id(1)

    @pl.when(n_idx == 0)
    def _init():
        acc_ref[...] = jnp.full(acc_ref.shape, -jnp.inf, acc_ref.dtype)

    bt, nt, d0 = x_ref.shape
    # Fold (batch-tile, point-chunk) into one M dimension for the MXU.
    x = x_ref[...].reshape(bt * nt, d0)  # bf16 rows
    for i in range(n_layers):
        y = jnp.dot(x, w_refs[i][...], preferred_element_type=jnp.float32)
        y = y + b_refs[i][...]  # f32 bias add
        if i < n_layers - 1:    # last Linear has no ReLU (see module __init__)
            x = jnp.maximum(y, 0.0).astype(jnp.bfloat16)
        else:
            x = y               # keep final activations in f32 for the max

    d_last = x.shape[-1]
    # torch.max(x, 1)[0]: max over the points axis, done as a running max
    # over point chunks.
    chunk_max = jnp.max(x.reshape(bt, nt, d_last), axis=1)  # (bt, d_last) f32
    acc_ref[...] = jnp.maximum(acc_ref[...], chunk_max)

    @pl.when(n_idx == pl.num_programs(1) - 1)
    def _finalize():
        o_ref[...] = acc_ref[...].astype(o_ref.dtype)


def _largest_tile(total, limit):
    """Largest divisor of `total` that is <= `limit`, preferring multiples of 8."""
    if total <= limit:
        return total
    best, best8 = 1, None
    for c in range(1, limit + 1):
        if total % c == 0:
            best = c
            if c % 8 == 0:
                best8 = c
    return best8 if best8 is not None else best


def pointnet_forward(pc, weights, biases):
    """pc: (B, N, d0) f32; weights[i]: (d_i, d_{i+1}); biases[i]: (1, d_{i+1})."""
    B, N, d0 = pc.shape
    n_layers = len(weights)
    d_out = weights[-1].shape[1]
    d_max = max([d0] + [w.shape[1] for w in weights])

    # bf16 operands for the MXU (f32 accumulation in-kernel); halves input DMA.
    pc_bf16 = pc.astype(jnp.bfloat16)
    w_bf16 = [w.astype(jnp.bfloat16) for w in weights]
    b_f32 = [b.astype(jnp.float32) for b in biases]

    # Row budget per grid step: keep the widest f32 activation block ~4 MiB so
    # the tile (+ double-buffered bf16 input chunks + resident weights) fits
    # under the default scoped-VMEM limit on v5e/v6e and the smaller v7x VMEM.
    budget_bytes = 4 * 1024 * 1024
    max_rows = int(max(256, min(2048, budget_bytes // (4 * d_max))))

    n_tile = _largest_tile(N, max_rows)
    b_tile = _largest_tile(B, max(1, max_rows // n_tile))
    grid = (B // b_tile, N // n_tile)  # (parallel batch tiles, point chunks)

    in_specs = [pl.BlockSpec((b_tile, n_tile, d0), lambda b, n: (b, n, 0))]
    # Weights/biases: constant index_map over BOTH grid axes -> fetched once.
    for w in w_bf16:
        in_specs.append(pl.BlockSpec(w.shape, lambda b, n: (0, 0)))
    for bias in b_f32:
        in_specs.append(pl.BlockSpec(bias.shape, lambda b, n: (0, 0)))

    # Multi-row output slab per step; constant along the reduction axis so it
    # stays resident and is written once at the last point chunk.
    out_spec = pl.BlockSpec((b_tile, d_out), lambda b, n: (b, 0))

    kernel = functools.partial(_pointnet_kernel, n_layers)
    return pl.pallas_call(
        kernel,
        grid=grid,
        in_specs=in_specs,
        out_specs=out_spec,
        out_shape=jax.ShapeDtypeStruct((B, d_out), pc.dtype),
        scratch_shapes=[pltpu.VMEM((b_tile, d_out), jnp.float32)],
        compiler_params=pltpu.CompilerParams(
            dimension_semantics=("parallel", "arbitrary")),
    )(pc_bf16, *w_bf16, *b_f32)


def _reference_forward(pc, weights, biases):
    x = pc
    n_layers = len(weights)
    for i in range(n_layers):
        x = x @ weights[i] + biases[i]
        if i < n_layers - 1:
            x = jnp.maximum(x, 0.0)
    return jnp.max(x, axis=1).reshape(-1, weights[-1].shape[1])


if __name__ == "__main__":
    # Module config: feat_dims_list = [8, 32, 64]
    #   -> shared_mlps = [Linear(8,32)+ReLU, Linear(32,64)]  (no ReLU on last)
    feat_dims_list = [8, 32, 64]
    B, N = 2, 16

    key = jax.random.PRNGKey(0)
    k_pc, *k_params = jax.random.split(key, 1 + 2 * (len(feat_dims_list) - 1))

    pc = jax.random.normal(k_pc, (B, N, feat_dims_list[0]), dtype=jnp.float32)

    weights, biases = [], []
    for i in range(len(feat_dims_list) - 1):
        d_in, d_o = feat_dims_list[i], feat_dims_list[i + 1]
        kw = k_params[2 * i]
        kb = k_params[2 * i + 1]
        scale = 1.0 / jnp.sqrt(jnp.float32(d_in))
        # stored as (in, out): y = x @ W + b  (equivalent to torch x @ W_t.T + b)
        weights.append(jax.random.uniform(kw, (d_in, d_o), jnp.float32, -scale, scale))
        biases.append(jax.random.uniform(kb, (1, d_o), jnp.float32, -scale, scale))

    out = pointnet_forward(pc, weights, biases)
    out = jax.block_until_ready(out)

    ref = _reference_forward(pc, weights, biases)
    assert out.shape == (B, feat_dims_list[-1])
    # bf16 matmul operands (f32 accumulation) vs f32 reference -> loosened tol.
    assert jnp.allclose(out, ref, atol=5e-2, rtol=5e-2), float(
        jnp.max(jnp.abs(out - ref)))

    print("KERNEL_OK")
</pallas_src>

<mosaic_0001>
module attributes {stable_mosaic.version = 11 : i64} {
  func.func @_pointnet_kernel(%arg0: i32, %arg1: i32, %arg2: memref<2x16x8xbf16, #tpu.memory_space<vmem>>, %arg3: memref<8x32xbf16, #tpu.memory_space<vmem>>, %arg4: memref<32x64xbf16, #tpu.memory_space<vmem>>, %arg5: memref<1x32xf32, #tpu.memory_space<vmem>>, %arg6: memref<1x64xf32, #tpu.memory_space<vmem>>, %arg7: memref<2x64xf32, #tpu.memory_space<vmem>>, %arg8: memref<2x64xf32, #tpu.memory_space<vmem>>) attributes {dimension_semantics = [#tpu.dimension_semantics<parallel>, #tpu.dimension_semantics<arbitrary>], iteration_bounds = array<i64: 1, 1>, scalar_prefetch = 0 : i64, scratch_operands = 1 : i64, tpu.core_type = #tpu.core_type<tc>, window_params = [{transform_indices = @transform_0, window_bounds = array<i64: 2, 16, 8>}, {pipeline_mode = #tpu.pipeline_mode<synchronous>, transform_indices = @transform_1, window_bounds = array<i64: 8, 32>}, {pipeline_mode = #tpu.pipeline_mode<synchronous>, transform_indices = @transform_2, window_bounds = array<i64: 32, 64>}, {pipeline_mode = #tpu.pipeline_mode<synchronous>, transform_indices = @transform_3, window_bounds = array<i64: 1, 32>}, {pipeline_mode = #tpu.pipeline_mode<synchronous>, transform_indices = @transform_4, window_bounds = array<i64: 1, 64>}, {transform_indices = @transform_5, window_bounds = array<i64: 2, 64>}]} {
    %c0_i32 = arith.constant 0 : i32
    %0 = arith.cmpi eq, %arg1, %c0_i32 : i32
    %1 = arith.extui %0 : i1 to i32
    %c0_i32_0 = arith.constant 0 : i32
    %2 = arith.cmpi ne, %1, %c0_i32_0 : i32
    scf.if %2 {
      %cst_20 = arith.constant 0xFF800000 : f32
      %26 = vector.broadcast %cst_20 : f32 to vector<2x64xf32>
      %c0_21 = arith.constant 0 : index
      %c0_22 = arith.constant 0 : index
      %27 = vector.load %arg8[%c0_21, %c0_22] : memref<2x64xf32, #tpu.memory_space<vmem>>, vector<2x64xf32>
      tpu.vector_store %arg8[%c0_21, %c0_22], %26 {strides = array<i32>} : memref<2x64xf32, #tpu.memory_space<vmem>>, vector<2x64xf32>,
    } else {
    }
    %c0 = arith.constant 0 : index
    %c0_1 = arith.constant 0 : index
    %c0_2 = arith.constant 0 : index
    %3 = vector.load %arg2[%c0, %c0_1, %c0_2] : memref<2x16x8xbf16, #tpu.memory_space<vmem>>, vector<2x16x8xbf16>
    %4 = vector.shape_cast %3 : vector<2x16x8xbf16> to vector<32x8xbf16>
    %c0_3 = arith.constant 0 : index
    %c0_4 = arith.constant 0 : index
    %5 = vector.load %arg3[%c0_3, %c0_4] : memref<8x32xbf16, #tpu.memory_space<vmem>>, vector<8x32xbf16>
    %cst = arith.constant dense<0.000000e+00> : vector<32x32xf32>
    %6 = tpu.matmul %4, %5, %cst {dimension_numbers = #tpu.dot_dimension_numbers<[1], [0], [0], [1], [0, 0, 1, 1], [], []>} : vector<32x8xbf16>, vector<8x32xbf16>, vector<32x32xf32> -> vector<32x32xf32>
    %c0_5 = arith.constant 0 : index
    %c0_6 = arith.constant 0 : index
    %7 = vector.load %arg5[%c0_5, %c0_6] : memref<1x32xf32, #tpu.memory_space<vmem>>, vector<1x32xf32>
    %8 = vector.broadcast %7 : vector<1x32xf32> to vector<32x32xf32>
    %9 = arith.addf %6, %8 : vector<32x32xf32>
    %cst_7 = arith.constant 0.000000e+00 : f32
    %10 = vector.broadcast %cst_7 : f32 to vector<32x32xf32>
    %11 = arith.maximumf %9, %10 : vector<32x32xf32>
    %12 = arith.truncf %11 : vector<32x32xf32> to vector<32x32xbf16>
    %c0_8 = arith.constant 0 : index
    %c0_9 = arith.constant 0 : index
    %13 = vector.load %arg4[%c0_8, %c0_9] : memref<32x64xbf16, #tpu.memory_space<vmem>>, vector<32x64xbf16>
    %cst_10 = arith.constant dense<0.000000e+00> : vector<32x64xf32>
    %14 = tpu.matmul %12, %13, %cst_10 {dimension_numbers = #tpu.dot_dimension_numbers<[1], [0], [0], [1], [0, 0, 1, 1], [], []>} : vector<32x32xbf16>, vector<32x64xbf16>, vector<32x64xf32> -> vector<32x64xf32>
    %c0_11 = arith.constant 0 : index
    %c0_12 = arith.constant 0 : index
    %15 = vector.load %arg6[%c0_11, %c0_12] : memref<1x64xf32, #tpu.memory_space<vmem>>, vector<1x64xf32>
    %16 = vector.broadcast %15 : vector<1x64xf32> to vector<32x64xf32>
    %17 = arith.addf %14, %16 : vector<32x64xf32>
    %18 = vector.shape_cast %17 : vector<32x64xf32> to vector<2x16x64xf32>
    %cst_13 = arith.constant dense<0xFF800000> : vector<2x64xf32>
    %19 = vector.multi_reduction <maximumf>, %18, %cst_13 [1] : vector<2x16x64xf32> to vector<2x64xf32>
    %c0_14 = arith.constant 0 : index
    %c0_15 = arith.constant 0 : index
    %20 = vector.load %arg8[%c0_14, %c0_15] : memref<2x64xf32, #tpu.memory_space<vmem>>, vector<2x64xf32>
    %21 = arith.maximumf %20, %19 : vector<2x64xf32>
    %c0_16 = arith.constant 0 : index
    %c0_17 = arith.constant 0 : index
    %22 = vector.load %arg8[%c0_16, %c0_17] : memref<2x64xf32, #tpu.memory_space<vmem>>, vector<2x64xf32>
    tpu.vector_store %arg8[%c0_16, %c0_17], %21 {strides = array<i32>} : memref<2x64xf32, #tpu.memory_space<vmem>>, vector<2x64xf32>,
    %c0_i32_18 = arith.constant 0 : i32
    %23 = arith.cmpi eq, %arg1, %c0_i32_18 : i32
    %24 = arith.extui %23 : i1 to i32
    %c0_i32_19 = arith.constant 0 : i32
    %25 = arith.cmpi ne, %24, %c0_i32_19 : i32
    scf.if %25 {
      %c0_20 = arith.constant 0 : index
      %c0_21 = arith.constant 0 : index
      %26 = vector.load %arg8[%c0_20, %c0_21] : memref<2x64xf32, #tpu.memory_space<vmem>>, vector<2x64xf32>
      %c0_22 = arith.constant 0 : index
      %c0_23 = arith.constant 0 : index
      %27 = vector.load %arg7[%c0_22, %c0_23] : memref<2x64xf32, #tpu.memory_space<vmem>>, vector<2x64xf32>
      tpu.vector_store %arg7[%c0_22, %c0_23], %26 {strides = array<i32>} : memref<2x64xf32, #tpu.memory_space<vmem>>, vector<2x64xf32>,
    } else {
    }
    return
  }
  func.func @transform_0(%arg0: i32, %arg1: i32) -> (i32, i32, i32) {
    %c0_i32 = arith.constant 0 : i32
    %c0_i32_0 = arith.constant 0 : i32
    return %arg0, %arg1, %c0_i32 : i32, i32, i32
  }
  func.func @transform_1(%arg0: i32, %arg1: i32) -> (i32, i32) {
    %c0_i32 = arith.constant 0 : i32
    %c0_i32_0 = arith.constant 0 : i32
    %c0_i32_1 = arith.constant 0 : i32
    return %c0_i32, %c0_i32_0 : i32, i32
  }
  func.func @transform_2(%arg0: i32, %arg1: i32) -> (i32, i32) {
    %c0_i32 = arith.constant 0 : i32
    %c0_i32_0 = arith.constant 0 : i32
    %c0_i32_1 = arith.constant 0 : i32
    return %c0_i32, %c0_i32_0 : i32, i32
  }
  func.func @transform_3(%arg0: i32, %arg1: i32) -> (i32, i32) {
    %c0_i32 = arith.constant 0 : i32
    %c0_i32_0 = arith.constant 0 : i32
    %c0_i32_1 = arith.constant 0 : i32
    return %c0_i32, %c0_i32_0 : i32, i32
  }
  func.func @transform_4(%arg0: i32, %arg1: i32) -> (i32, i32) {
    %c0_i32 = arith.constant 0 : i32
    %c0_i32_0 = arith.constant 0 : i32
    %c0_i32_1 = arith.constant 0 : i32
    return %c0_i32, %c0_i32_0 : i32, i32
  }
  func.func @transform_5(%arg0: i32, %arg1: i32) -> (i32, i32) {
    %c0_i32 = arith.constant 0 : i32
    %c0_i32_0 = arith.constant 0 : i32
    return %arg0, %c0_i32 : i32, i32
  }
}

</mosaic_0001>

<llo_original>
// kernel: tpu_custom_call.1
$region0: #{tpu_custom_call.1}
  #allocation0 [shape = 'u32[]', space=smem, size = 0x4, offset = 0x4, fixed_abs, tag = 'smem constant byte address 0x4 - core index']
  #allocation1 [shape = 'u32[144,128]{1,0:T(1,128)}', space=vmem, size = 0x12000, scoped, tag = 'internal scratch']
  #allocation2 [shape = 'f32[2,64]{1,0:T(2,128)}', space=vmem, size = 0x400, scoped, tag = 'scratch operand']
  %s0 = inlined_call_operand.vmem [shape: bf16[2,16,8], index: 0, kind: input, shape index: {}]
  %s1 = inlined_call_operand.vmem [shape: bf16[8,32], index: 1, kind: input, shape index: {}]
  %s2 = inlined_call_operand.vmem [shape: bf16[32,64], index: 2, kind: input, shape index: {}]
  %s3 = inlined_call_operand.vmem [shape: f32[1,32], index: 3, kind: input, shape index: {}]
  %s4 = inlined_call_operand.vmem [shape: f32[1,64], index: 4, kind: input, shape index: {}]
  %s5 = inlined_call_operand.hbm [shape: f32[2,64], index: 5, kind: output, shape index: {}]
  %s6 = sld [smem:[#allocation0]]
  $region38: #{tpu_custom_call.1} parent=0
    _
  %s8 = ssub.s32 1, %s6
  %s9 = scalar_select 0, %s8, %s6
  $region1: #{tpu_custom_call.1} parent=0
    #allocation3 [shape = 'u8[1024]{0}', space=vmem, size = 0x400, scoped, tag = 'output window, operand 0, single buffered']
    #allocation4 [shape = 's32[1]{0}', space=sflag, size = 0x4, scoped, tag = 'scoped memory for tpu_custom_call.1']
    %10 = vsyncpa [#allocation4], 0
    // Predicated region
    $region2: #{tpu_custom_call.1} parent=1 // pred_check
      _
    $region3: #{tpu_custom_call.1} parent=1 // pred_check_branch
      %12 = sbr.rel (0) target = $region5
    $region4: #{tpu_custom_call.1} parent=1 // pred_region
      _
    $region5: #{tpu_custom_call.1} parent=1 // pred_fallthru
      _
    // Predicated region
    $region6: #{tpu_custom_call.1} parent=1 // pred_check
      _
    $region7: #{tpu_custom_call.1} parent=1 // pred_check_branch
      %14 = sbr.rel (0) target = $region9
    $region8: #{tpu_custom_call.1} parent=1 // pred_region
      _
    $region9: #{tpu_custom_call.1} parent=1 // pred_fallthru
      _
    // Predicated region
    $region10: #{tpu_custom_call.1} parent=1 // pred_check
      _
    $region11: #{tpu_custom_call.1} parent=1 // pred_check_branch
      %16 = sbr.rel (0) target = $region13
    $region12: #{tpu_custom_call.1} parent=1 // pred_region
      _
    $region13: #{tpu_custom_call.1} parent=1 // pred_fallthru
      _
    // Predicated region
    $region14: #{tpu_custom_call.1} parent=1 // pred_check
      _
    $region15: #{tpu_custom_call.1} parent=1 // pred_check_branch
      %18 = sbr.rel (0) target = $region17
    $region16: #{tpu_custom_call.1} parent=1 // pred_region
      _
    $region17: #{tpu_custom_call.1} parent=1 // pred_fallthru
      _
    // Predicated region
    $region18: #{tpu_custom_call.1} parent=1 // pred_check
      _
    $region19: #{tpu_custom_call.1} parent=1 // pred_check_branch
      %20 = sbr.rel (0) target = $region21
    $region20: #{tpu_custom_call.1} parent=1 // pred_region
      _
    $region21: #{tpu_custom_call.1} parent=1 // pred_fallthru
      _
    %p22 = scmp.eq.s32.totalorder 0, 0
    // Predicated region
    $region22: #{tpu_custom_call.1} parent=1 // pred_check
      %p23 = pneg %p22
    $region23: #{tpu_custom_call.1} parent=1 // pred_check_branch
      %25 = sbr.rel (%p23) target = $region25
    $region24: #{tpu_custom_call.1} parent=1 // pred_region
      %vm26 = vcmask 517120
      %27 = vst.msk [vmem:[#allocation2] sm:$0x3] %vm26, -inf
    $region25: #{tpu_custom_call.1} parent=1 // pred_fallthru
      _
    %v28 = vld [vmem:[%s0] sm:$0xf]
    %v29 = vld [vmem:[%s0 + $0x4] sm:$0xf]
    %v30 = vld [vmem:[%s0 + $0x8] sm:$0xf]
    %v31 = vld [vmem:[%s0 + $0xc] sm:$0xf]
    %v32 = vld [vmem:[%s1] sm:$0xf]
    %v33 = vld [vmem:[%s3] sm:$0x1]
    %v35 = vlaneseq
    %v36 = vshrl.u32 %v35, 7
    %v37 = vsub.s32 0, %v36
    %v38 = vrot.slane %v33, %v37
    %v44 = vunpack.c.l.b16 %v28
    %v45 = vunpack.c.l.b16 %v29
    %v46 = vunpack.c.l.b16 %v30
    %v47 = vunpack.c.l.b16 %v31
    %v48 = vpack.c.b16 %v45, %v44
    %v49 = vpack.c.b16 %v47, %v46
    %vm50 = vcmask 64512
    %v52 = vsel %vm50, %v48, 0
    %v55 = vsel %vm50, %v49, 0
    %vm57 = vcmask 1043456
    %v59 = vsel %vm57, %v32, 0
    %61 = vmatprep.subr.bf16.mxu0 0
    %62 = vmatpush1.bf16.msra.mxu0 0
    %63 = vmatprep.subr.bf16.mxu0 0
    %64 = vmatpush1.bf16.msra.mxu0 0
    %65 = vmatprep.subr.bf16.mxu0 0
    %66 = vmatpush1.bf16.msra.mxu0 0
    %67 = vmatprep.subr.bf16.mxu0 0
    %68 = vmatpush1.bf16.msra.mxu0 0
    %69 = vmatprep.subr.bf16.mxu0 0
    %70 = vmatpush1.bf16.msra.mxu0 0
    %71 = vmatprep.subr.bf16.mxu0 0
    %72 = vmatpush1.bf16.msra.mxu0 0
    %73 = vmatprep.subr.bf16.mxu0 0
    %74 = vmatpush1.bf16.msra.mxu0 0
    %75 = vmatprep.subr.bf16.mxu0 0
    %76 = vmatpush1.bf16.msra.mxu0 %v59
    %77 = vmatprep.subr.bf16.mxu0 0
    %78 = vmatpush2.bf16.msra.mxu0 0
    %79 = vmatprep.subr.bf16.mxu0 0
    %80 = vmatpush2.bf16.msra.mxu0 0
    %81 = vmatprep.subr.bf16.mxu0 0
    %82 = vmatpush2.bf16.msra.mxu0 0
    %83 = vmatprep.subr.bf16.mxu0 0
    %84 = vmatpush2.bf16.msra.mxu0 0
    %85 = vmatprep.subr.bf16.mxu0 0
    %86 = vmatpush2.bf16.msra.mxu0 0
    %87 = vmatprep.subr.bf16.mxu0 0
    %88 = vmatpush2.bf16.msra.mxu0 0
    %89 = vmatprep.subr.bf16.mxu0 0
    %90 = vmatpush2.bf16.msra.mxu0 0
    %91 = vmatprep.subr.bf16.mxu0 0
    %92 = vmatpush2.bf16.msra.mxu0 0
    %93 = vmatprep.mubr.bf16.mxu0 0
    %94 = vmatmul.mubr.bf16.gmra.mxu0 %v52
    %v95 = vpop.f32.mrf.mxu0
    %v96 = vadd.f32 %v38, %v95
    %v97 = vpop.f32.mrf.mxu0
    %v98 = vpop.f32.mrf.mxu0
    %v99 = vadd.f32 %v38, %v98
    %v100 = vpop.f32.mrf.mxu0
    %101 = vmatprep.mubr.bf16.mxu0 0
    %102 = vmatmul.mubr.bf16.gmra.mxu0 %v55
    %v103 = vpop.f32.mrf.mxu0
    %v104 = vadd.f32 %v38, %v103
    %v105 = vpop.f32.mrf.mxu0
    %v106 = vpop.f32.mrf.mxu0
    %v107 = vadd.f32 %v38, %v106
    %v108 = vpop.f32.mrf.mxu0
    %109 = vdwg.mxu0
    %v110 = vmax.f32 %v96, 0.0
    %v111 = vmax.f32 %v99, 0.0
    %v112 = vmax.f32 %v104, 0.0
    %v113 = vmax.f32 %v107, 0.0
    %v114 = vpack.c.bf16 %v111, %v110
    %v115 = vpack.c.bf16 %v113, %v112
    %v116 = vld [vmem:[%s2] sm:$0xf]
    %v117 = vld [vmem:[%s2 + $0x4] sm:$0xf]
    %v118 = vld [vmem:[%s2 + $0x8] sm:$0xf]
    %v119 = vld [vmem:[%s2 + $0xc] sm:$0xf]
    %v120 = vld [vmem:[%s4] sm:$0x1]
    %v122 = vlaneseq
    %v123 = vshrl.u32 %v122, 7
    %v124 = vsub.s32 0, %v123
    %v125 = vrot.slane %v120, %v124
    %v131 = vunpack.c.l.b16 %v116
    %v132 = vunpack.c.l.b16 %v117
    %v133 = vunpack.c.l.b16 %v118
    %v134 = vunpack.c.l.b16 %v119
    %v135 = vpack.c.b16 %v132, %v131
    %v136 = vpack.c.b16 %v134, %v133
    %vm139 = vcmask 261120
    %v141 = vsel %vm139, %v114, 0
    %v144 = vsel %vm139, %v115, 0
    %146 = vmatprep.subr.bf16.mxu0 0
    %147 = vmatpush1.bf16.msra.mxu0 0
    %148 = vmatprep.subr.bf16.mxu0 0
    %149 = vmatpush1.bf16.msra.mxu0 0
    %150 = vmatprep.subr.bf16.mxu0 0
    %151 = vmatpush1.bf16.msra.mxu0 0
    %152 = vmatprep.subr.bf16.mxu0 0
    %153 = vmatpush1.bf16.msra.mxu0 0
    %154 = vmatprep.subr.bf16.mxu0 0
    %155 = vmatpush1.bf16.msra.mxu0 0
    %156 = vmatprep.subr.bf16.mxu0 0
    %157 = vmatpush1.bf16.msra.mxu0 0
    %158 = vmatprep.subr.bf16.mxu0 0
    %159 = vmatpush1.bf16.msra.mxu0 %v136
    %160 = vmatprep.subr.bf16.mxu0 0
    %161 = vmatpush1.bf16.msra.mxu0 %v135
    %162 = vmatprep.subr.bf16.mxu0 0
    %163 = vmatpush2.bf16.msra.mxu0 0
    %164 = vmatprep.subr.bf16.mxu0 0
    %165 = vmatpush2.bf16.msra.mxu0 0
    %166 = vmatprep.subr.bf16.mxu0 0
    %167 = vmatpush2.bf16.msra.mxu0 0
    %168 = vmatprep.subr.bf16.mxu0 0
    %169 = vmatpush2.bf16.msra.mxu0 0
    %170 = vmatprep.subr.bf16.mxu0 0
    %171 = vmatpush2.bf16.msra.mxu0 0
    %172 = vmatprep.subr.bf16.mxu0 0
    %173 = vmatpush2.bf16.msra.mxu0 0
    %174 = vmatprep.subr.bf16.mxu0 0
    %175 = vmatpush2.bf16.msra.mxu0 0
    %176 = vmatprep.subr.bf16.mxu0 0
    %177 = vmatpush2.bf16.msra.mxu0 0
    %178 = vmatprep.mubr.bf16.mxu0 0
    %179 = vmatmul.mubr.bf16.gmra.mxu0 %v141
    %v180 = vpop.f32.mrf.mxu0
    %v181 = vadd.f32 %v125, %v180
    %v182 = vpop.f32.mrf.mxu0
    %v183 = vpop.f32.mrf.mxu0
    %v184 = vadd.f32 %v125, %v183
    %v185 = vpop.f32.mrf.mxu0
    %186 = vmatprep.mubr.bf16.mxu0 0
    %187 = vmatmul.mubr.bf16.gmra.mxu0 %v144
    %v188 = vpop.f32.mrf.mxu0
    %v189 = vadd.f32 %v125, %v188
    %v190 = vpop.f32.mrf.mxu0
    %v191 = vpop.f32.mrf.mxu0
    %v192 = vadd.f32 %v125, %v191
    %v193 = vpop.f32.mrf.mxu0
    %194 = vdwg.mxu0
    %vm195 = vcmask 523264
    %v196 = vsel %vm195, %v181, -inf
    %v197 = vsel %vm195, %v184, -inf
    %v198 = vmax.f32 %v196, %v197
    %v199 = vrot.slane %v198, 4
    %v200 = vmax.f32 %v198, %v199
    %v201 = vrot.slane %v200, 2
    %v202 = vmax.f32 %v200, %v201
    %v203 = vrot.slane %v202, 1
    %v204 = vmax.f32 %v202, %v203
    %v205 = vsel %vm195, %v189, -inf
    %v206 = vsel %vm195, %v192, -inf
    %v207 = vmax.f32 %v205, %v206
    %v208 = vrot.slane %v207, 4
    %v209 = vmax.f32 %v207, %v208
    %v210 = vrot.slane %v209, 2
    %v211 = vmax.f32 %v209, %v210
    %v212 = vrot.slane %v211, 1
    %v213 = vmax.f32 %v211, %v212
    %v214 = vld [vmem:[#allocation2] sm:$0x3]
    %vm217 = vcmask 1041409
    %v218 = vsel %vm217, %v213, %v204
    %v220 = vmax.f32 %v214, %v218
    %vm221 = vcmask 517120
    %222 = vst.msk [vmem:[#allocation2] sm:$0x3] %vm221, %v220
    // Predicated region
    $region26: #{tpu_custom_call.1} parent=1 // pred_check
      %p223 = pneg %p22
    $region27: #{tpu_custom_call.1} parent=1 // pred_check_branch
      %225 = sbr.rel (%p223) target = $region29
    $region28: #{tpu_custom_call.1} parent=1 // pred_region
      %v226 = vld [vmem:[#allocation2] sm:$0x3]
      %227 = vst.msk [vmem:[#allocation3] sm:$0x3] %vm221, %v226
    $region29: #{tpu_custom_call.1} parent=1 // pred_fallthru
      _
    // Predicated region
    $region30: #{tpu_custom_call.1} parent=1 // pred_check
      _
    $region31: #{tpu_custom_call.1} parent=1 // pred_check_branch
      %229 = sbr.rel (0) target = $region33
    $region32: #{tpu_custom_call.1} parent=1 // pred_region
      %s231 = ssub.s32 32, 32
      %232 = vsyncadd [#allocation4], %s231
      %s234 = sshll.u32 [#allocation3], 4
      %s235 = int_to_ptr.vmem [resolvable:$true] %s234
      %237 = dma.vmem_to_hbm [thread:$0]  %s235, 32, %s5, [#allocation4]
    $region33: #{tpu_custom_call.1} parent=1 // pred_fallthru
      _
    // Predicated region
    $region34: #{tpu_custom_call.1} parent=1 // pred_check
      _
    $region35: #{tpu_custom_call.1} parent=1 // pred_check_branch
      %239 = sbr.rel (0) target = $region37
    $region36: #{tpu_custom_call.1} parent=1 // pred_region
      %240 = dma.done [#allocation4], 32
    $region37: #{tpu_custom_call.1} parent=1 // pred_fallthru
      _
    %241 = vsyncpa [#allocation4], 1

</llo_original>
